<compile_context>
chip_gen: v6e
topology: v6e:2x2x1
jax: 0.10.0
libtpu: 0.0.40
codegen_flags: <defaults>
</compile_context>

<pallas_src>
from functools import partial

import jax
import jax.numpy as jnp
from jax.experimental import pallas as pl
from jax.experimental.pallas import tpu as pltpu


def conv_block_kernel(x_ref, w_ref, m_ref, o_ref, *, B, W, HW, KH, KW,
                      pad_h, pad_w, eps):
    """One grid step == B batch elements, spatial-on-lanes layout.

    x_ref: (B, C_in_pad, H*W)        flattened (unpadded) input images
    w_ref: (C_out, KH*KW*C_in_pad)   conv weight, taps packed along K
    m_ref: (KH*KW*C_in_pad, B*H*W)   precomputed tap-validity mask (0/1)
    o_ref: (B, C_out, H*W)           fused conv + instance-norm + relu output
    """
    C_in_pad = x_ref.shape[1]
    BHW = B * HW

    # Images concatenated along the lane axis: (C_in_pad, B*HW).  HW is a
    # multiple of 128, so this is a lane-tile-aligned stitch (vreg copies).
    if B == 1:
        xv = x_ref[0]
    else:
        xv = jnp.concatenate([x_ref[b] for b in range(B)], axis=1)

    # Packed patch block: tap (kh, kw) is a cyclic lane-roll of the flattened
    # slab by the flat displacement dr*W + dc, multiplied by the precomputed
    # validity mask (zero pad + image-boundary isolation).  Valid lanes never
    # read outside their own image's lane range, so the roll is safe even
    # across the image boundaries of the packed slab.
    taps = []
    for t in range(KH * KW):
        kh, kw = divmod(t, KW)
        off = (kh - pad_h) * W + (kw - pad_w)
        patch = xv if off == 0 else pltpu.roll(xv, shift=(-off) % BHW, axis=1)
        taps.append(patch * m_ref[t * C_in_pad:(t + 1) * C_in_pad, :])
    # Every chunk is C_in_pad (a sublane-tile multiple) rows -> aligned stack.
    pmat = jnp.concatenate(taps, axis=0)          # (KH*KW*C_in_pad, B*HW)

    # Single MXU matmul for all B images, lane-dense f32 accumulator.
    acc = jnp.dot(w_ref[...], pmat, preferred_element_type=jnp.float32)

    # Per-image InstanceNorm2d(affine=False) with two-pass variance, + ReLU.
    # Static lane slices are 128-aligned (HW multiple of 128).
    inv_hw = 1.0 / HW
    for b in range(B):
        a = acc[:, b * HW:(b + 1) * HW]
        mean = jnp.sum(a, axis=-1, keepdims=True) * inv_hw
        cen = a - mean
        var = jnp.sum(cen * cen, axis=-1, keepdims=True) * inv_hw
        y = cen * jax.lax.rsqrt(var + eps)
        # TODO(synk): for bf16 I/O, stack 2 images along the output sublane
        # axis (C_out=8 < the 16-row bf16 tile) to keep stores full-tile.
        o_ref[b] = jnp.maximum(y, 0.0).astype(o_ref.dtype)


def _pick_batch_block(n, max_block=16):
    """Largest divisor of n that is <= max_block while keeping >= 2 grid steps
    (so v7x's two TensorCores both get work)."""
    if n <= 1:
        return 1
    best = 1
    for b in range(1, min(max_block, n // 2) + 1):
        if n % b == 0:
            best = b
    return best


def conv_block_forward(x_nchw, weight, bias=None, *, stride=1, padding=1,
                       eps=1e-5, batch_block=None):
    """ConvBlock forward. x_nchw: (N, C_in, H, W); weight (HWIO): (KH, KW, C_in, C_out)."""
    N, C_in, H, W = x_nchw.shape
    KH, KW, wci, C_out = weight.shape
    assert wci == C_in
    # TODO(synk): only the module defaults are implemented: stride=1 and
    # 'same' padding (2*padding == kernel_size-1).
    assert stride == 1 and 2 * padding == KH - 1 and 2 * padding == KW - 1

    HW = H * W
    dtype = x_nchw.dtype
    itemsize = dtype.itemsize

    # Conv bias is mathematically cancelled by InstanceNorm2d(affine=False).
    del bias

    # Pad C_in up to a full sublane tile so every per-tap chunk of the patch
    # block is (8,128)-aligned (no sublane relayouts when stacking taps).
    # No-op whenever C_in is already a sublane multiple (typical real nets).
    sublane = max(8, 32 // itemsize)
    C_in_pad = -(-C_in // sublane) * sublane
    x_flat = x_nchw.reshape(N, C_in, HW)          # metadata-only reshape
    w_hwio = weight
    if C_in_pad != C_in:
        x_flat = jnp.pad(x_flat, ((0, 0), (0, C_in_pad - C_in), (0, 0)))
        w_hwio = jnp.pad(weight, ((0, 0), (0, 0), (0, C_in_pad - C_in), (0, 0)))
    Kdim = KH * KW * C_in_pad
    w_mat = jnp.transpose(w_hwio, (3, 0, 1, 2)).reshape(C_out, Kdim)

    # Batch packing: B images per grid step, keeping >= 2 parallel steps.
    B = batch_block if batch_block is not None else _pick_batch_block(N)
    assert N % B == 0
    n_steps = N // B
    BHW = B * HW

    # Grid-invariant tap-validity mask, built once here (not per grid step):
    # rows are laid out exactly like pmat (tap-major, C_in_pad rows per tap),
    # lanes are the B packed images.
    p = jnp.arange(HW, dtype=jnp.int32)
    h_idx, w_idx = p // W, p % W
    rows = []
    for kh in range(KH):
        dr = kh - padding
        for kw in range(KW):
            dc = kw - padding
            rows.append((h_idx + dr >= 0) & (h_idx + dr < H) &
                        (w_idx + dc >= 0) & (w_idx + dc < W))
    mask = jnp.stack(rows, axis=0).astype(dtype)   # (KH*KW, HW)
    mask = jnp.repeat(mask, C_in_pad, axis=0)      # (Kdim, HW)
    mask = jnp.tile(mask, (1, B))                  # (Kdim, B*HW)

    kernel = partial(conv_block_kernel, B=B, W=W, HW=HW, KH=KH, KW=KW,
                     pad_h=padding, pad_w=padding, eps=eps)

    # Generation-aware VMEM budget: ~75% of physical capacity
    # (~48 MiB on v7x, ~96 MiB on v5e/v6e) instead of a hardcoded 64 MiB cap.
    try:
        vmem_cap = pltpu.get_tpu_info().vmem_capacity_bytes
    except Exception:
        vmem_cap = 64 << 20
    vmem_budget = (vmem_cap * 3) // 4
    io_bytes = 2 * B * (C_in_pad + C_out) * HW * itemsize          # double-buffered x/out
    const_bytes = 2 * (C_out * Kdim + Kdim * BHW) * itemsize       # weights + mask
    live_bytes = 2 * (Kdim + C_out) * BHW * 4                      # pmat + f32 acc working set
    vmem_limit = int(min(io_bytes + const_bytes + live_bytes + (8 << 20),
                         vmem_budget))

    cost = pl.CostEstimate(
        flops=2 * N * C_out * HW * KH * KW * C_in,
        transcendentals=N * C_out,
        bytes_accessed=(N * (C_in_pad + C_out) * HW
                        + C_out * Kdim + Kdim * BHW) * itemsize,
    )

    # TODO(synk): for large images, add a spatial row-tile grid axis (marked
    # "arbitrary") with a `padding`-row halo, carry per-channel sum/sumsq in
    # VMEM scratch across row tiles, and normalize+ReLU in a finalize pass;
    # size the tiles against the per-generation budget above (~48 MiB usable
    # on v7x vs ~96+ MiB on v5e/v6e).
    out_flat = pl.pallas_call(
        kernel,
        out_shape=jax.ShapeDtypeStruct((N, C_out, HW), dtype),
        grid=(n_steps,),
        in_specs=[
            pl.BlockSpec((B, C_in_pad, HW), lambda n: (n, 0, 0)),
            pl.BlockSpec((C_out, Kdim), lambda n: (0, 0)),
            pl.BlockSpec((Kdim, BHW), lambda n: (0, 0)),
        ],
        out_specs=pl.BlockSpec((B, C_out, HW), lambda n: (n, 0, 0)),
        compiler_params=pltpu.CompilerParams(
            dimension_semantics=("parallel",),
            vmem_limit_bytes=vmem_limit,
        ),
        cost_estimate=cost,
    )(x_flat, w_mat, mask)

    return out_flat.reshape(N, C_out, H, W)


def reference_forward(x_nchw, weight, bias, eps=1e-5):
    """Pure-JAX reference (lax conv + InstanceNorm + ReLU), bias included."""
    w_oihw = jnp.transpose(weight, (3, 2, 0, 1))
    y = jax.lax.conv_general_dilated(
        x_nchw, w_oihw, window_strides=(1, 1), padding=((1, 1), (1, 1)),
        dimension_numbers=("NCHW", "OIHW", "NCHW"))
    y = y + bias[None, :, None, None]
    mean = jnp.mean(y, axis=(2, 3), keepdims=True)
    var = jnp.mean((y - mean) ** 2, axis=(2, 3), keepdims=True)
    y = (y - mean) / jnp.sqrt(var + eps)
    return jnp.maximum(y, 0.0)


if __name__ == "__main__":
    # Small shapes consistent with ConvBlock(in_channels=4, out_channels=8);
    # N=8 exercises batch packing (B=4) while keeping 2 parallel grid steps.
    N, C_in, H, W = 8, 4, 16, 16
    C_out, K = 8, 3

    key = jax.random.PRNGKey(0)
    kx, kw, kb = jax.random.split(key, 3)
    x = jax.random.normal(kx, (N, C_in, H, W), dtype=jnp.float32)
    # Deterministic synthetic params (Conv2d weight/bias), HWIO weight layout.
    weight = 0.1 * jax.random.normal(kw, (K, K, C_in, C_out), dtype=jnp.float32)
    bias = 0.1 * jax.random.normal(kb, (C_out,), dtype=jnp.float32)

    out = jax.block_until_ready(conv_block_forward(x, weight, bias))
    ref = jax.block_until_ready(reference_forward(x, weight, bias))

    assert out.shape == (N, C_out, H, W), out.shape
    assert jnp.allclose(out, ref, atol=1e-4, rtol=1e-4), "mismatch vs reference"

    print("KERNEL_OK")
</pallas_src>

<mosaic_0001>
module attributes {stable_mosaic.version = 11 : i64} {
  func.func @conv_block_kernel(%arg0: i32, %arg1: memref<4x8x256xf32, #tpu.memory_space<vmem>>, %arg2: memref<8x72xf32, #tpu.memory_space<vmem>>, %arg3: memref<72x1024xf32, #tpu.memory_space<vmem>>, %arg4: memref<4x8x256xf32, #tpu.memory_space<vmem>>) attributes {dimension_semantics = [#tpu.dimension_semantics<parallel>], iteration_bounds = array<i64: 2>, scalar_prefetch = 0 : i64, scratch_operands = 0 : i64, tpu.core_type = #tpu.core_type<tc>, window_params = [{transform_indices = @transform_0, window_bounds = array<i64: 4, 8, 256>}, {pipeline_mode = #tpu.pipeline_mode<synchronous>, transform_indices = @transform_1, window_bounds = array<i64: 8, 72>}, {pipeline_mode = #tpu.pipeline_mode<synchronous>, transform_indices = @transform_2, window_bounds = array<i64: 72, 1024>}, {transform_indices = @transform_3, window_bounds = array<i64: 4, 8, 256>}]} {
    %c0 = arith.constant 0 : index
    %c0_0 = arith.constant 0 : index
    %c0_1 = arith.constant 0 : index
    %0 = vector.load %arg1[%c0, %c0_0, %c0_1] : memref<4x8x256xf32, #tpu.memory_space<vmem>>, vector<1x8x256xf32>
    %1 = vector.shape_cast %0 : vector<1x8x256xf32> to vector<8x256xf32>
    %c1 = arith.constant 1 : index
    %c0_2 = arith.constant 0 : index
    %c0_3 = arith.constant 0 : index
    %2 = vector.load %arg1[%c1, %c0_2, %c0_3] : memref<4x8x256xf32, #tpu.memory_space<vmem>>, vector<1x8x256xf32>
    %3 = vector.shape_cast %2 : vector<1x8x256xf32> to vector<8x256xf32>
    %c2 = arith.constant 2 : index
    %c0_4 = arith.constant 0 : index
    %c0_5 = arith.constant 0 : index
    %4 = vector.load %arg1[%c2, %c0_4, %c0_5] : memref<4x8x256xf32, #tpu.memory_space<vmem>>, vector<1x8x256xf32>
    %5 = vector.shape_cast %4 : vector<1x8x256xf32> to vector<8x256xf32>
    %c3 = arith.constant 3 : index
    %c0_6 = arith.constant 0 : index
    %c0_7 = arith.constant 0 : index
    %6 = vector.load %arg1[%c3, %c0_6, %c0_7] : memref<4x8x256xf32, #tpu.memory_space<vmem>>, vector<1x8x256xf32>
    %7 = vector.shape_cast %6 : vector<1x8x256xf32> to vector<8x256xf32>
    %8 = tpu.concatenate %1, %3, %5, %7 in 1 : vector<8x256xf32>, vector<8x256xf32>, vector<8x256xf32>, vector<8x256xf32> -> vector<8x1024xf32>
    %c17_i32 = arith.constant 17 : i32
    %9 = tpu.dynamic_rotate %8 by %c17_i32 dim 1 : vector<8x1024xf32>, i32 -> vector<8x1024xf32>
    %c0_8 = arith.constant 0 : index
    %c0_9 = arith.constant 0 : index
    %10 = vector.load %arg3[%c0_8, %c0_9] : memref<72x1024xf32, #tpu.memory_space<vmem>>, vector<8x1024xf32>
    %11 = arith.mulf %9, %10 : vector<8x1024xf32>
    %c16_i32 = arith.constant 16 : i32
    %12 = tpu.dynamic_rotate %8 by %c16_i32 dim 1 : vector<8x1024xf32>, i32 -> vector<8x1024xf32>
    %c8 = arith.constant 8 : index
    %c0_10 = arith.constant 0 : index
    %13 = vector.load %arg3[%c8, %c0_10] : memref<72x1024xf32, #tpu.memory_space<vmem>>, vector<8x1024xf32>
    %14 = arith.mulf %12, %13 : vector<8x1024xf32>
    %c15_i32 = arith.constant 15 : i32
    %15 = tpu.dynamic_rotate %8 by %c15_i32 dim 1 : vector<8x1024xf32>, i32 -> vector<8x1024xf32>
    %c16 = arith.constant 16 : index
    %c0_11 = arith.constant 0 : index
    %16 = vector.load %arg3[%c16, %c0_11] : memref<72x1024xf32, #tpu.memory_space<vmem>>, vector<8x1024xf32>
    %17 = arith.mulf %15, %16 : vector<8x1024xf32>
    %c1_i32 = arith.constant 1 : i32
    %18 = tpu.dynamic_rotate %8 by %c1_i32 dim 1 : vector<8x1024xf32>, i32 -> vector<8x1024xf32>
    %c24 = arith.constant 24 : index
    %c0_12 = arith.constant 0 : index
    %19 = vector.load %arg3[%c24, %c0_12] : memref<72x1024xf32, #tpu.memory_space<vmem>>, vector<8x1024xf32>
    %20 = arith.mulf %18, %19 : vector<8x1024xf32>
    %c32 = arith.constant 32 : index
    %c0_13 = arith.constant 0 : index
    %21 = vector.load %arg3[%c32, %c0_13] : memref<72x1024xf32, #tpu.memory_space<vmem>>, vector<8x1024xf32>
    %22 = arith.mulf %8, %21 : vector<8x1024xf32>
    %c1023_i32 = arith.constant 1023 : i32
    %23 = tpu.dynamic_rotate %8 by %c1023_i32 dim 1 : vector<8x1024xf32>, i32 -> vector<8x1024xf32>
    %c40 = arith.constant 40 : index
    %c0_14 = arith.constant 0 : index
    %24 = vector.load %arg3[%c40, %c0_14] : memref<72x1024xf32, #tpu.memory_space<vmem>>, vector<8x1024xf32>
    %25 = arith.mulf %23, %24 : vector<8x1024xf32>
    %c1009_i32 = arith.constant 1009 : i32
    %26 = tpu.dynamic_rotate %8 by %c1009_i32 dim 1 : vector<8x1024xf32>, i32 -> vector<8x1024xf32>
    %c48 = arith.constant 48 : index
    %c0_15 = arith.constant 0 : index
    %27 = vector.load %arg3[%c48, %c0_15] : memref<72x1024xf32, #tpu.memory_space<vmem>>, vector<8x1024xf32>
    %28 = arith.mulf %26, %27 : vector<8x1024xf32>
    %c1008_i32 = arith.constant 1008 : i32
    %29 = tpu.dynamic_rotate %8 by %c1008_i32 dim 1 : vector<8x1024xf32>, i32 -> vector<8x1024xf32>
    %c56 = arith.constant 56 : index
    %c0_16 = arith.constant 0 : index
    %30 = vector.load %arg3[%c56, %c0_16] : memref<72x1024xf32, #tpu.memory_space<vmem>>, vector<8x1024xf32>
    %31 = arith.mulf %29, %30 : vector<8x1024xf32>
    %c1007_i32 = arith.constant 1007 : i32
    %32 = tpu.dynamic_rotate %8 by %c1007_i32 dim 1 : vector<8x1024xf32>, i32 -> vector<8x1024xf32>
    %c64 = arith.constant 64 : index
    %c0_17 = arith.constant 0 : index
    %33 = vector.load %arg3[%c64, %c0_17] : memref<72x1024xf32, #tpu.memory_space<vmem>>, vector<8x1024xf32>
    %34 = arith.mulf %32, %33 : vector<8x1024xf32>
    %35 = tpu.concatenate %11, %14, %17, %20, %22, %25, %28, %31, %34 in 0 : vector<8x1024xf32>, vector<8x1024xf32>, vector<8x1024xf32>, vector<8x1024xf32>, vector<8x1024xf32>, vector<8x1024xf32>, vector<8x1024xf32>, vector<8x1024xf32>, vector<8x1024xf32> -> vector<72x1024xf32>
    %c0_18 = arith.constant 0 : index
    %c0_19 = arith.constant 0 : index
    %36 = vector.load %arg2[%c0_18, %c0_19] : memref<8x72xf32, #tpu.memory_space<vmem>>, vector<8x72xf32>
    %cst = arith.constant dense<0.000000e+00> : vector<8x1024xf32>
    %37 = tpu.matmul %36, %35, %cst {dimension_numbers = #tpu.dot_dimension_numbers<[1], [0], [0], [1], [0, 0, 1, 1], [], []>} : vector<8x72xf32>, vector<72x1024xf32>, vector<8x1024xf32> -> vector<8x1024xf32>
    %38 = vector.extract_strided_slice %37 {offsets = [0, 0], sizes = [8, 256], strides = [1, 1]} : vector<8x1024xf32> to vector<8x256xf32>
    %cst_20 = arith.constant dense<0.000000e+00> : vector<8xf32>
    %39 = vector.multi_reduction <add>, %38, %cst_20 [1] : vector<8x256xf32> to vector<8xf32>
    %40 = vector.shape_cast %39 : vector<8xf32> to vector<8x1xf32>
    %cst_21 = arith.constant 3.906250e-03 : f32
    %41 = vector.broadcast %cst_21 : f32 to vector<8x1xf32>
    %42 = arith.mulf %40, %41 : vector<8x1xf32>
    %43 = vector.broadcast %42 : vector<8x1xf32> to vector<8x256xf32>
    %44 = arith.subf %38, %43 : vector<8x256xf32>
    %45 = arith.mulf %44, %44 : vector<8x256xf32>
    %cst_22 = arith.constant dense<0.000000e+00> : vector<8xf32>
    %46 = vector.multi_reduction <add>, %45, %cst_22 [1] : vector<8x256xf32> to vector<8xf32>
    %47 = vector.shape_cast %46 : vector<8xf32> to vector<8x1xf32>
    %cst_23 = arith.constant 3.906250e-03 : f32
    %48 = vector.broadcast %cst_23 : f32 to vector<8x1xf32>
    %49 = arith.mulf %47, %48 : vector<8x1xf32>
    %cst_24 = arith.constant 9.99999974E-6 : f32
    %50 = vector.broadcast %cst_24 : f32 to vector<8x1xf32>
    %51 = arith.addf %49, %50 : vector<8x1xf32>
    %52 = math.rsqrt %51 : vector<8x1xf32>
    %53 = vector.broadcast %52 : vector<8x1xf32> to vector<8x256xf32>
    %54 = arith.mulf %44, %53 : vector<8x256xf32>
    %cst_25 = arith.constant 0.000000e+00 : f32
    %55 = vector.broadcast %cst_25 : f32 to vector<8x256xf32>
    %56 = arith.maximumf %54, %55 : vector<8x256xf32>
    %c0_26 = arith.constant 0 : index
    %c0_27 = arith.constant 0 : index
    %c0_28 = arith.constant 0 : index
    %57 = vector.load %arg4[%c0_26, %c0_27, %c0_28] : memref<4x8x256xf32, #tpu.memory_space<vmem>>, vector<1x8x256xf32>
    %58 = vector.shape_cast %57 : vector<1x8x256xf32> to vector<8x256xf32>
    %59 = vector.shape_cast %56 : vector<8x256xf32> to vector<1x8x256xf32>
    tpu.vector_store %arg4[%c0_26, %c0_27, %c0_28], %59 {strides = array<i32>} : memref<4x8x256xf32, #tpu.memory_space<vmem>>, vector<1x8x256xf32>,
    %60 = vector.extract_strided_slice %37 {offsets = [0, 256], sizes = [8, 256], strides = [1, 1]} : vector<8x1024xf32> to vector<8x256xf32>
    %cst_29 = arith.constant dense<0.000000e+00> : vector<8xf32>
    %61 = vector.multi_reduction <add>, %60, %cst_29 [1] : vector<8x256xf32> to vector<8xf32>
    %62 = vector.shape_cast %61 : vector<8xf32> to vector<8x1xf32>
    %cst_30 = arith.constant 3.906250e-03 : f32
    %63 = vector.broadcast %cst_30 : f32 to vector<8x1xf32>
    %64 = arith.mulf %62, %63 : vector<8x1xf32>
    %65 = vector.broadcast %64 : vector<8x1xf32> to vector<8x256xf32>
    %66 = arith.subf %60, %65 : vector<8x256xf32>
    %67 = arith.mulf %66, %66 : vector<8x256xf32>
    %cst_31 = arith.constant dense<0.000000e+00> : vector<8xf32>
    %68 = vector.multi_reduction <add>, %67, %cst_31 [1] : vector<8x256xf32> to vector<8xf32>
    %69 = vector.shape_cast %68 : vector<8xf32> to vector<8x1xf32>
    %cst_32 = arith.constant 3.906250e-03 : f32
    %70 = vector.broadcast %cst_32 : f32 to vector<8x1xf32>
    %71 = arith.mulf %69, %70 : vector<8x1xf32>
    %cst_33 = arith.constant 9.99999974E-6 : f32
    %72 = vector.broadcast %cst_33 : f32 to vector<8x1xf32>
    %73 = arith.addf %71, %72 : vector<8x1xf32>
    %74 = math.rsqrt %73 : vector<8x1xf32>
    %75 = vector.broadcast %74 : vector<8x1xf32> to vector<8x256xf32>
    %76 = arith.mulf %66, %75 : vector<8x256xf32>
    %cst_34 = arith.constant 0.000000e+00 : f32
    %77 = vector.broadcast %cst_34 : f32 to vector<8x256xf32>
    %78 = arith.maximumf %76, %77 : vector<8x256xf32>
    %c1_35 = arith.constant 1 : index
    %c0_36 = arith.constant 0 : index
    %c0_37 = arith.constant 0 : index
    %79 = vector.load %arg4[%c1_35, %c0_36, %c0_37] : memref<4x8x256xf32, #tpu.memory_space<vmem>>, vector<1x8x256xf32>
    %80 = vector.shape_cast %79 : vector<1x8x256xf32> to vector<8x256xf32>
    %81 = vector.shape_cast %78 : vector<8x256xf32> to vector<1x8x256xf32>
    tpu.vector_store %arg4[%c1_35, %c0_36, %c0_37], %81 {strides = array<i32>} : memref<4x8x256xf32, #tpu.memory_space<vmem>>, vector<1x8x256xf32>,
    %82 = vector.extract_strided_slice %37 {offsets = [0, 512], sizes = [8, 256], strides = [1, 1]} : vector<8x1024xf32> to vector<8x256xf32>
    %cst_38 = arith.constant dense<0.000000e+00> : vector<8xf32>
    %83 = vector.multi_reduction <add>, %82, %cst_38 [1] : vector<8x256xf32> to vector<8xf32>
    %84 = vector.shape_cast %83 : vector<8xf32> to vector<8x1xf32>
    %cst_39 = arith.constant 3.906250e-03 : f32
    %85 = vector.broadcast %cst_39 : f32 to vector<8x1xf32>
    %86 = arith.mulf %84, %85 : vector<8x1xf32>
    %87 = vector.broadcast %86 : vector<8x1xf32> to vector<8x256xf32>
    %88 = arith.subf %82, %87 : vector<8x256xf32>
    %89 = arith.mulf %88, %88 : vector<8x256xf32>
    %cst_40 = arith.constant dense<0.000000e+00> : vector<8xf32>
    %90 = vector.multi_reduction <add>, %89, %cst_40 [1] : vector<8x256xf32> to vector<8xf32>
    %91 = vector.shape_cast %90 : vector<8xf32> to vector<8x1xf32>
    %cst_41 = arith.constant 3.906250e-03 : f32
    %92 = vector.broadcast %cst_41 : f32 to vector<8x1xf32>
    %93 = arith.mulf %91, %92 : vector<8x1xf32>
    %cst_42 = arith.constant 9.99999974E-6 : f32
    %94 = vector.broadcast %cst_42 : f32 to vector<8x1xf32>
    %95 = arith.addf %93, %94 : vector<8x1xf32>
    %96 = math.rsqrt %95 : vector<8x1xf32>
    %97 = vector.broadcast %96 : vector<8x1xf32> to vector<8x256xf32>
    %98 = arith.mulf %88, %97 : vector<8x256xf32>
    %cst_43 = arith.constant 0.000000e+00 : f32
    %99 = vector.broadcast %cst_43 : f32 to vector<8x256xf32>
    %100 = arith.maximumf %98, %99 : vector<8x256xf32>
    %c2_44 = arith.constant 2 : index
    %c0_45 = arith.constant 0 : index
    %c0_46 = arith.constant 0 : index
    %101 = vector.load %arg4[%c2_44, %c0_45, %c0_46] : memref<4x8x256xf32, #tpu.memory_space<vmem>>, vector<1x8x256xf32>
    %102 = vector.shape_cast %101 : vector<1x8x256xf32> to vector<8x256xf32>
    %103 = vector.shape_cast %100 : vector<8x256xf32> to vector<1x8x256xf32>
    tpu.vector_store %arg4[%c2_44, %c0_45, %c0_46], %103 {strides = array<i32>} : memref<4x8x256xf32, #tpu.memory_space<vmem>>, vector<1x8x256xf32>,
    %104 = vector.extract_strided_slice %37 {offsets = [0, 768], sizes = [8, 256], strides = [1, 1]} : vector<8x1024xf32> to vector<8x256xf32>
    %cst_47 = arith.constant dense<0.000000e+00> : vector<8xf32>
    %105 = vector.multi_reduction <add>, %104, %cst_47 [1] : vector<8x256xf32> to vector<8xf32>
    %106 = vector.shape_cast %105 : vector<8xf32> to vector<8x1xf32>
    %cst_48 = arith.constant 3.906250e-03 : f32
    %107 = vector.broadcast %cst_48 : f32 to vector<8x1xf32>
    %108 = arith.mulf %106, %107 : vector<8x1xf32>
    %109 = vector.broadcast %108 : vector<8x1xf32> to vector<8x256xf32>
    %110 = arith.subf %104, %109 : vector<8x256xf32>
    %111 = arith.mulf %110, %110 : vector<8x256xf32>
    %cst_49 = arith.constant dense<0.000000e+00> : vector<8xf32>
    %112 = vector.multi_reduction <add>, %111, %cst_49 [1] : vector<8x256xf32> to vector<8xf32>
    %113 = vector.shape_cast %112 : vector<8xf32> to vector<8x1xf32>
    %cst_50 = arith.constant 3.906250e-03 : f32
    %114 = vector.broadcast %cst_50 : f32 to vector<8x1xf32>
    %115 = arith.mulf %113, %114 : vector<8x1xf32>
    %cst_51 = arith.constant 9.99999974E-6 : f32
    %116 = vector.broadcast %cst_51 : f32 to vector<8x1xf32>
    %117 = arith.addf %115, %116 : vector<8x1xf32>
    %118 = math.rsqrt %117 : vector<8x1xf32>
    %119 = vector.broadcast %118 : vector<8x1xf32> to vector<8x256xf32>
    %120 = arith.mulf %110, %119 : vector<8x256xf32>
    %cst_52 = arith.constant 0.000000e+00 : f32
    %121 = vector.broadcast %cst_52 : f32 to vector<8x256xf32>
    %122 = arith.maximumf %120, %121 : vector<8x256xf32>
    %c3_53 = arith.constant 3 : index
    %c0_54 = arith.constant 0 : index
    %c0_55 = arith.constant 0 : index
    %123 = vector.load %arg4[%c3_53, %c0_54, %c0_55] : memref<4x8x256xf32, #tpu.memory_space<vmem>>, vector<1x8x256xf32>
    %124 = vector.shape_cast %123 : vector<1x8x256xf32> to vector<8x256xf32>
    %125 = vector.shape_cast %122 : vector<8x256xf32> to vector<1x8x256xf32>
    tpu.vector_store %arg4[%c3_53, %c0_54, %c0_55], %125 {strides = array<i32>} : memref<4x8x256xf32, #tpu.memory_space<vmem>>, vector<1x8x256xf32>,
    return
  }
  func.func @transform_0(%arg0: i32) -> (i32, i32, i32) {
    %c0_i32 = arith.constant 0 : i32
    %c0_i32_0 = arith.constant 0 : i32
    %c0_i32_1 = arith.constant 0 : i32
    return %arg0, %c0_i32, %c0_i32_0 : i32, i32, i32
  }
  func.func @transform_1(%arg0: i32) -> (i32, i32) {
    %c0_i32 = arith.constant 0 : i32
    %c0_i32_0 = arith.constant 0 : i32
    %c0_i32_1 = arith.constant 0 : i32
    return %c0_i32, %c0_i32_0 : i32, i32
  }
  func.func @transform_2(%arg0: i32) -> (i32, i32) {
    %c0_i32 = arith.constant 0 : i32
    %c0_i32_0 = arith.constant 0 : i32
    %c0_i32_1 = arith.constant 0 : i32
    return %c0_i32, %c0_i32_0 : i32, i32
  }
  func.func @transform_3(%arg0: i32) -> (i32, i32, i32) {
    %c0_i32 = arith.constant 0 : i32
    %c0_i32_0 = arith.constant 0 : i32
    %c0_i32_1 = arith.constant 0 : i32
    return %arg0, %c0_i32, %c0_i32_0 : i32, i32, i32
  }
}

</mosaic_0001>

<llo_original>
// kernel: tpu_custom_call.1
$region0: #{tpu_custom_call.1}
  #allocation0 [shape = 'u32[]', space=smem, size = 0x4, offset = 0x4, fixed_abs, tag = 'smem constant byte address 0x4 - core index']
  #allocation1 [shape = 'u32[144,128]{1,0:T(1,128)}', space=vmem, size = 0x12000, scoped, tag = 'internal scratch']
  %s0 = inlined_call_operand.hbm [shape: f32[8,8,256], index: 0, kind: input, shape index: {}]
  %s1 = inlined_call_operand.hbm [shape: f32[8,72], index: 1, kind: input, shape index: {}]
  %s2 = inlined_call_operand.hbm [shape: f32[72,1024], index: 2, kind: input, shape index: {}]
  %s3 = inlined_call_operand.hbm [shape: f32[8,8,256], index: 3, kind: output, shape index: {}]
  %s4 = sld [smem:[#allocation0]]
  $region57: #{tpu_custom_call.1} parent=0
    _
  %s6 = ssub.s32 1, %s4
  %s7 = scalar_select 0, %s6, %s4
  $region1: #{tpu_custom_call.1} parent=0
    #allocation2 [shape = 'u8[65536]{0}', space=vmem, size = 0x10000, scoped, tag = 'input window, operand 0']
    #allocation3 [shape = 's32[2]{0}', space=sflag, size = 0x8, scoped, tag = 'scoped memory for tpu_custom_call.1']
    #allocation4 [shape = 's32[2]{0}', space=sflag, size = 0x8, scoped, tag = 'scoped memory for tpu_custom_call.1']
    #allocation5 [shape = 'u8[4096]{0}', space=vmem, size = 0x1000, scoped, tag = 'input window, operand 1, single buffered']
    #allocation6 [shape = 's32[1]{0}', space=sflag, size = 0x4, scoped, tag = 'scoped memory for tpu_custom_call.1']
    #allocation7 [shape = 'u8[294912]{0}', space=vmem, size = 0x48000, scoped, tag = 'input window, operand 2, single buffered']
    #allocation8 [shape = 'u8[65536]{0}', space=vmem, size = 0x10000, scoped, tag = 'output window, operand 0']
    %8 = vsyncpa [#allocation3], 0
    %s9 = scalar_lea.sflag [#allocation3], 1
    %10 = vsyncpa %s9, 0
    %11 = vsyncpa [#allocation6], 0
    %12 = vsyncpa [#allocation4], 0
    %s13 = scalar_lea.sflag [#allocation4], 1
    %14 = vsyncpa %s13, 0
    loop: start=0, step=1, limit=4
    $region2: #{tpu_custom_call.1} parent=1 // loop_pre_header
      _
    $region3: #{tpu_custom_call.1} parent=1 // loop_header
      %s16 = sphi 0, %s20
      %p17 = scmp.ge.s32.totalorder %s16, 4
      %s26 = sphi 0, %s28
      %s29 = sphi 0, %s26
      %s30 = sphi 0, %s29
      %s46 = sphi 0, %s30
      %s50 = sphi 0, %s50
      %s52 = sphi 0, %s50
      %s53 = sphi 0, %s52
      %s67 = sphi 0, %s53
      %s71 = sphi 0, %s71
      %s73 = sphi 0, %s71
      %s74 = sphi 0, %s73
      %s88 = sphi 0, %s74
      %s94 = sphi 0, %s96
      %s97 = sphi 0, %s94
      %s98 = sphi 0, %s97
      %s114 = sphi 0, %s98
    $region4: #{tpu_custom_call.1} parent=1 // loop_header_branch
      %19 = sbr.rel (%p17) target = $region8
    $region5: #{tpu_custom_call.1} parent=1 // loop_body
      %s21 = ssub.s32 %s16, 1
      %s22 = ssub.s32 %s16, 2
      %s23 = sadd.s32 %s16, 1
      %s24 = ssub.s32 %s16, %s23
      %p25 = scmp.eq.s32.totalorder %s24, 0
      %s27 = sadd.s32 %s26, 1
      %s28 = scalar_select %p25, %s26, %s27
      %p31 = pneg %p25
      %p32 = scmp.eq.s32.totalorder %s16, 1
      %p33 = por %p31, %p32
      %p34 = scmp.ne.s32.totalorder %s26, %s29
      %p35 = scmp.eq.s32.totalorder %s16, 0
      %p36 = por %p34, %p35
      %p37 = scmp.ne.s32.totalorder %s26, %s29
      %p38 = scmp.eq.s32.totalorder %s21, 1
      %p39 = por %p37, %p38
      %p40 = scmp.ne.s32.totalorder %s29, %s30
      %p41 = scmp.eq.s32.totalorder %s21, 0
      %p42 = por %p40, %p41
      %p43 = scmp.ne.s32.totalorder %s29, %s30
      %p44 = scmp.eq.s32.totalorder %s22, 1
      %p45 = por %p43, %p44
      %p47 = scmp.ne.s32.totalorder %s30, %s46
      %p48 = scmp.eq.s32.totalorder %s22, 0
      %p49 = por %p47, %p48
      %s51 = sadd.s32 %s50, 1
      %p54 = scmp.eq.s32.totalorder %s16, 1
      %p55 = scmp.ne.s32.totalorder %s50, %s52
      %p56 = scmp.eq.s32.totalorder %s16, 0
      %p57 = por %p55, %p56
      %p58 = scmp.ne.s32.totalorder %s50, %s52
      %p59 = scmp.eq.s32.totalorder %s21, 1
      %p60 = por %p58, %p59
      %p61 = scmp.ne.s32.totalorder %s52, %s53
      %p62 = scmp.eq.s32.totalorder %s21, 0
      %p63 = por %p61, %p62
      %p64 = scmp.ne.s32.totalorder %s52, %s53
      %p65 = scmp.eq.s32.totalorder %s22, 1
      %p66 = por %p64, %p65
      %p68 = scmp.ne.s32.totalorder %s53, %s67
      %p69 = scmp.eq.s32.totalorder %s22, 0
      %p70 = por %p68, %p69
      %s72 = sadd.s32 %s71, 1
      %p75 = scmp.eq.s32.totalorder %s16, 1
      %p76 = scmp.ne.s32.totalorder %s71, %s73
      %p77 = scmp.eq.s32.totalorder %s16, 0
      %p78 = por %p76, %p77
      %p79 = scmp.ne.s32.totalorder %s71, %s73
      %p80 = scmp.eq.s32.totalorder %s21, 1
      %p81 = por %p79, %p80
      %p82 = scmp.ne.s32.totalorder %s73, %s74
      %p83 = scmp.eq.s32.totalorder %s21, 0
      %p84 = por %p82, %p83
      %p85 = scmp.ne.s32.totalorder %s73, %s74
      %p86 = scmp.eq.s32.totalorder %s22, 1
      %p87 = por %p85, %p86
      %p89 = scmp.ne.s32.totalorder %s74, %s88
      %p90 = scmp.eq.s32.totalorder %s22, 0
      %p91 = por %p89, %p90
      %s92 = ssub.s32 %s16, %s23
      %p93 = scmp.eq.s32.totalorder %s92, 0
      %s95 = sadd.s32 %s94, 1
      %s96 = scalar_select %p93, %s94, %s95
      %p99 = pneg %p93
      %p100 = scmp.eq.s32.totalorder %s16, 1
      %p101 = por %p99, %p100
      %p102 = scmp.ne.s32.totalorder %s94, %s97
      %p103 = scmp.eq.s32.totalorder %s16, 0
      %p104 = por %p102, %p103
      %p105 = scmp.ne.s32.totalorder %s94, %s97
      %p106 = scmp.eq.s32.totalorder %s21, 1
      %p107 = por %p105, %p106
      %p108 = scmp.ne.s32.totalorder %s97, %s98
      %p109 = scmp.eq.s32.totalorder %s21, 0
      %p110 = por %p108, %p109
      %p111 = scmp.ne.s32.totalorder %s97, %s98
      %p112 = scmp.eq.s32.totalorder %s22, 1
      %p113 = por %p111, %p112
      %p115 = scmp.ne.s32.totalorder %s98, %s114
      %p116 = scmp.eq.s32.totalorder %s22, 0
      %p117 = por %p115, %p116
      %p118 = scmp.le.s32.totalorder 1, %s16
      %p119 = scmp.lt.s32.totalorder %s16, 3
      %p120 = pnand %p118, %p119
      %p121 = pneg %p120
      // Predicated region
      $region9: #{tpu_custom_call.1} parent=5 // pred_check
        _
      $region10: #{tpu_custom_call.1} parent=5 // pred_check_branch
        %123 = sbr.rel (%p120) target = $region12
      $region11: #{tpu_custom_call.1} parent=5 // pred_region
        %s124 = ssub.s32 %s16, 1
        // Predicated region
        $region13: #{tpu_custom_call.1} parent=11 // pred_check
          %p125 = pneg %p63
        $region14: #{tpu_custom_call.1} parent=11 // pred_check_branch
          %127 = sbr.rel (%p125) target = $region16
        $region15: #{tpu_custom_call.1} parent=11 // pred_region
          %s129 = ssub.s32 128, 128
          %130 = vsyncadd [#allocation6], %s129
          %s132 = sshll.u32 [#allocation5], 4
          %s133 = int_to_ptr.vmem [resolvable:$true] %s132
          %135 = dma.hbm_to_vmem [thread:$0]  %s1, 128, %s133, [#allocation6]
        $region16: #{tpu_custom_call.1} parent=11 // pred_fallthru
          _
        // Predicated region
        $region17: #{tpu_custom_call.1} parent=11 // pred_check
          %p136 = pneg %p84
        $region18: #{tpu_custom_call.1} parent=11 // pred_check_branch
          %138 = sbr.rel (%p136) target = $region20
        $region19: #{tpu_custom_call.1} parent=11 // pred_region
          %s140 = ssub.s32 9216, 9216
          %141 = vsyncadd [#allocation6], %s140
          %s142 = sshll.u32 [#allocation7], 4
          %s143 = int_to_ptr.vmem [resolvable:$true] %s142
          %148 = dma.hbm_to_vmem [thread:$0]  %s2, 9216, %s143, [#allocation6], 1024, 1024, 64
        $region20: #{tpu_custom_call.1} parent=11 // pred_fallthru
          _
      $region12: #{tpu_custom_call.1} parent=5 // pred_fallthru
        _
      %p149 = scmp.lt.s32.totalorder %s16, 2
      // Predicated region
      $region21: #{tpu_custom_call.1} parent=5 // pred_check
        %p150 = pneg %p149
      $region22: #{tpu_custom_call.1} parent=5 // pred_check_branch
        %152 = sbr.rel (%p150) target = $region24
      $region23: #{tpu_custom_call.1} parent=5 // pred_region
        // Predicated region
        $region25: #{tpu_custom_call.1} parent=23 // pred_check
          %p153 = pneg %p36
        $region26: #{tpu_custom_call.1} parent=23 // pred_check_branch
          %155 = sbr.rel (%p153) target = $region28
        $region27: #{tpu_custom_call.1} parent=23 // pred_region
          %s156 = sand.u32 %s26, 1
          %s157 = scalar_lea.sflag [#allocation3], %s156
          %s158 = sand.u32 %s26, 1
          %s159 = smul.addr %s158, 64
          %s160 = scalar_lea.vmem [#allocation2], %s159
          %s161 = smul.u32 4, %s16
          %s163 = ssub.s32 1024, 1024
          %164 = vsyncadd %s157, %s163
          %s165 = smul.addr %s161, 2
          %s166 = smul.addr %s165, 128
          %s167 = scalar_lea.hbm %s0, %s166
          %s168 = sshll.u32 %s160, 4
          %s169 = int_to_ptr.vmem [resolvable:$true] %s168
          %174 = dma.hbm_to_vmem [thread:$0]  %s167, 1024, %s169, %s157, 256, 256, 16
        $region28: #{tpu_custom_call.1} parent=23 // pred_fallthru
          _
      $region24: #{tpu_custom_call.1} parent=5 // pred_fallthru
        _
      %p175 = scmp.le.s32.totalorder 1, %s16
      %p176 = scmp.lt.s32.totalorder %s16, 3
      %p177 = pnand %p175, %p176
      %p178 = pneg %p177
      // Predicated region
      $region29: #{tpu_custom_call.1} parent=5 // pred_check
        _
      $region30: #{tpu_custom_call.1} parent=5 // pred_check_branch
        %180 = sbr.rel (%p177) target = $region32
      $region31: #{tpu_custom_call.1} parent=5 // pred_region
        %s181 = ssub.s32 %s16, 1
        %s182 = sand.u32 %s29, 1
        %s183 = scalar_lea.sflag [#allocation3], %s182
        %s184 = sand.u32 %s29, 1
        %s185 = smul.addr %s184, 64
        %s186 = scalar_lea.vmem [#allocation2], %s185
        // Predicated region
        $region33: #{tpu_custom_call.1} parent=31 // pred_check
          %p187 = pneg %p42
        $region34: #{tpu_custom_call.1} parent=31 // pred_check_branch
          %189 = sbr.rel (%p187) target = $region36
        $region35: #{tpu_custom_call.1} parent=31 // pred_region
          %190 = dma.done %s183, 1024
        $region36: #{tpu_custom_call.1} parent=31 // pred_fallthru
          _
        // Predicated region
        $region37: #{tpu_custom_call.1} parent=31 // pred_check
          %p191 = pneg %p63
        $region38: #{tpu_custom_call.1} parent=31 // pred_check_branch
          %193 = sbr.rel (%p191) target = $region40
        $region39: #{tpu_custom_call.1} parent=31 // pred_region
          %194 = dma.done [#allocation6], 128
        $region40: #{tpu_custom_call.1} parent=31 // pred_fallthru
          _
        // Predicated region
        $region41: #{tpu_custom_call.1} parent=31 // pred_check
          %p195 = pneg %p84
        $region42: #{tpu_custom_call.1} parent=31 // pred_check_branch
          %197 = sbr.rel (%p195) target = $region44
        $region43: #{tpu_custom_call.1} parent=31 // pred_region
          %198 = dma.done [#allocation6], 9216
        $region44: #{tpu_custom_call.1} parent=31 // pred_fallthru
          _
        %s199 = sand.u32 %s29, 1
        %s200 = scalar_lea.sflag [#allocation3], %s199
        %s201 = sand.u32 %s29, 1
        %s202 = smul.addr %s201, 64
        %s203 = scalar_lea.vmem [#allocation2], %s202
        %p204 = pneg %p42
        %p205 = pneg %p39
        %p206 = pneg %p63
        %p207 = pneg %p60
        %p208 = pneg %p84
        %p209 = pneg %p81
        %p210 = pneg %p110
        %p211 = pneg %p107
        %s212 = sand.u32 %s97, 1
        %s213 = scalar_lea.sflag [#allocation4], %s212
        %s214 = sand.u32 %s97, 1
        %s215 = smul.addr %s214, 64
        %s216 = scalar_lea.vmem [#allocation8], %s215
        %s217 = smul.u32 4, %s21
        %s218 = smul.u32 4, %s21
        %v219 = vld [vmem:[%s186] sm:$0xff]
        %v220 = vld [vmem:[%s186 + $0x8] sm:$0xff]
        %s221 = scalar_lea.vmem %s186, 16 [#allocation2]
        %v222 = vld [vmem:[%s221] sm:$0xff]
        %v223 = vld [vmem:[%s221 + $0x8] sm:$0xff]
        %s224 = scalar_lea.vmem %s186, 32 [#allocation2]
        %v225 = vld [vmem:[%s224] sm:$0xff]
        %v226 = vld [vmem:[%s224 + $0x8] sm:$0xff]
        %s227 = scalar_lea.vmem %s186, 48 [#allocation2]
        %v228 = vld [vmem:[%s227] sm:$0xff]
        %v229 = vld [vmem:[%s227 + $0x8] sm:$0xff]
        %230 = vrot.lane.b32.xlu0 %v219, 17
        %v231 = vpop.permute.xlu0 %230
        %232 = vrot.lane.b32.xlu0 %v220, 17
        %v233 = vpop.permute.xlu0 %232
        %234 = vrot.lane.b32.xlu0 %v222, 17
        %v235 = vpop.permute.xlu0 %234
        %236 = vrot.lane.b32.xlu0 %v223, 17
        %v237 = vpop.permute.xlu0 %236
        %238 = vrot.lane.b32.xlu0 %v225, 17
        %v239 = vpop.permute.xlu0 %238
        %240 = vrot.lane.b32.xlu0 %v226, 17
        %v241 = vpop.permute.xlu0 %240
        %242 = vrot.lane.b32.xlu0 %v228, 17
        %v243 = vpop.permute.xlu0 %242
        %244 = vrot.lane.b32.xlu0 %v229, 17
        %v245 = vpop.permute.xlu0 %244
        %v246 = vlaneseq
        %v247 = vand.u32 %v246, 127
        %vm248 = vcmp.lt.s32.totalorder %v247, 17
        %v249 = vsel %vm248, %v243, %v245
        %v250 = vsel %vm248, %v241, %v243
        %v251 = vsel %vm248, %v239, %v241
        %v252 = vsel %vm248, %v237, %v239
        %v253 = vsel %vm248, %v235, %v237
        %v254 = vsel %vm248, %v233, %v235
        %v255 = vsel %vm248, %v231, %v233
        %v256 = vsel %vm248, %v245, %v231
        %v257 = vld [vmem:[#allocation7] sm:$0xff]
        %v258 = vld [vmem:[#allocation7 + $0x8] sm:$0xff]
        %v259 = vld [vmem:[#allocation7 + $0x10] sm:$0xff]
        %v260 = vld [vmem:[#allocation7 + $0x18] sm:$0xff]
        %v261 = vld [vmem:[#allocation7 + $0x20] sm:$0xff]
        %v262 = vld [vmem:[#allocation7 + $0x28] sm:$0xff]
        %v263 = vld [vmem:[#allocation7 + $0x30] sm:$0xff]
        %v264 = vld [vmem:[#allocation7 + $0x38] sm:$0xff]
        %v265 = vmul.f32 %v256, %v257
        %v266 = vmul.f32 %v255, %v258
        %v267 = vmul.f32 %v254, %v259
        %v268 = vmul.f32 %v253, %v260
        %v269 = vmul.f32 %v252, %v261
        %v270 = vmul.f32 %v251, %v262
        %v271 = vmul.f32 %v250, %v263
        %v272 = vmul.f32 %v249, %v264
        %273 = vrot.lane.b32.xlu0 %v219, 16
        %v274 = vpop.permute.xlu0 %273
        %275 = vrot.lane.b32.xlu0 %v220, 16
        %v276 = vpop.permute.xlu0 %275
        %277 = vrot.lane.b32.xlu0 %v222, 16
        %v278 = vpop.permute.xlu0 %277
        %279 = vrot.lane.b32.xlu0 %v223, 16
        %v280 = vpop.permute.xlu0 %279
        %281 = vrot.lane.b32.xlu0 %v225, 16
        %v282 = vpop.permute.xlu0 %281
        %283 = vrot.lane.b32.xlu0 %v226, 16
        %v284 = vpop.permute.xlu0 %283
        %285 = vrot.lane.b32.xlu0 %v228, 16
        %v286 = vpop.permute.xlu0 %285
        %287 = vrot.lane.b32.xlu0 %v229, 16
        %v288 = vpop.permute.xlu0 %287
        %vm289 = vcmp.lt.s32.totalorder %v247, 16
        %v290 = vsel %vm289, %v286, %v288
        %v291 = vsel %vm289, %v284, %v286
        %v292 = vsel %vm289, %v282, %v284
        %v293 = vsel %vm289, %v280, %v282
        %v294 = vsel %vm289, %v278, %v280
        %v295 = vsel %vm289, %v276, %v278
        %v296 = vsel %vm289, %v274, %v276
        %v297 = vsel %vm289, %v288, %v274
        %v298 = vld [vmem:[#allocation7 + $0x40] sm:$0xff]
        %v299 = vld [vmem:[#allocation7 + $0x48] sm:$0xff]
        %v300 = vld [vmem:[#allocation7 + $0x50] sm:$0xff]
        %v301 = vld [vmem:[#allocation7 + $0x58] sm:$0xff]
        %v302 = vld [vmem:[#allocation7 + $0x60] sm:$0xff]
        %v303 = vld [vmem:[#allocation7 + $0x68] sm:$0xff]
        %v304 = vld [vmem:[#allocation7 + $0x70] sm:$0xff]
        %v305 = vld [vmem:[#allocation7 + $0x78] sm:$0xff]
        %v306 = vmul.f32 %v297, %v298
        %v307 = vmul.f32 %v296, %v299
        %v308 = vmul.f32 %v295, %v300
        %v309 = vmul.f32 %v294, %v301
        %v310 = vmul.f32 %v293, %v302
        %v311 = vmul.f32 %v292, %v303
        %v312 = vmul.f32 %v291, %v304
        %v313 = vmul.f32 %v290, %v305
        %314 = vrot.lane.b32.xlu0 %v219, 15
        %v315 = vpop.permute.xlu0 %314
        %316 = vrot.lane.b32.xlu0 %v220, 15
        %v317 = vpop.permute.xlu0 %316
        %318 = vrot.lane.b32.xlu0 %v222, 15
        %v319 = vpop.permute.xlu0 %318
        %320 = vrot.lane.b32.xlu0 %v223, 15
        %v321 = vpop.permute.xlu0 %320
        %322 = vrot.lane.b32.xlu0 %v225, 15
        %v323 = vpop.permute.xlu0 %322
        %324 = vrot.lane.b32.xlu0 %v226, 15
        %v325 = vpop.permute.xlu0 %324
        %326 = vrot.lane.b32.xlu0 %v228, 15
        %v327 = vpop.permute.xlu0 %326
        %328 = vrot.lane.b32.xlu0 %v229, 15
        %v329 = vpop.permute.xlu0 %328
        %vm330 = vcmp.lt.s32.totalorder %v247, 15
        %v331 = vsel %vm330, %v327, %v329
        %v332 = vsel %vm330, %v325, %v327
        %v333 = vsel %vm330, %v323, %v325
        %v334 = vsel %vm330, %v321, %v323
        %v335 = vsel %vm330, %v319, %v321
        %v336 = vsel %vm330, %v317, %v319
        %v337 = vsel %vm330, %v315, %v317
        %v338 = vsel %vm330, %v329, %v315
        %v339 = vld [vmem:[#allocation7 + $0x80] sm:$0xff]
        %v340 = vld [vmem:[#allocation7 + $0x88] sm:$0xff]
        %v341 = vld [vmem:[#allocation7 + $0x90] sm:$0xff]
        %v342 = vld [vmem:[#allocation7 + $0x98] sm:$0xff]
        %v343 = vld [vmem:[#allocation7 + $0xa0] sm:$0xff]
        %v344 = vld [vmem:[#allocation7 + $0xa8] sm:$0xff]
        %v345 = vld [vmem:[#allocation7 + $0xb0] sm:$0xff]
        %v346 = vld [vmem:[#allocation7 + $0xb8] sm:$0xff]
        %v347 = vmul.f32 %v338, %v339
        %v348 = vmul.f32 %v337, %v340
        %v349 = vmul.f32 %v336, %v341
        %v350 = vmul.f32 %v335, %v342
        %v351 = vmul.f32 %v334, %v343
        %v352 = vmul.f32 %v333, %v344
        %v353 = vmul.f32 %v332, %v345
        %v354 = vmul.f32 %v331, %v346
        %355 = vrot.lane.b32.xlu0 %v219, 1
        %v356 = vpop.permute.xlu0 %355
        %357 = vrot.lane.b32.xlu0 %v220, 1
        %v358 = vpop.permute.xlu0 %357
        %359 = vrot.lane.b32.xlu0 %v222, 1
        %v360 = vpop.permute.xlu0 %359
        %361 = vrot.lane.b32.xlu0 %v223, 1
        %v362 = vpop.permute.xlu0 %361
        %363 = vrot.lane.b32.xlu0 %v225, 1
        %v364 = vpop.permute.xlu0 %363
        %365 = vrot.lane.b32.xlu0 %v226, 1
        %v366 = vpop.permute.xlu0 %365
        %367 = vrot.lane.b32.xlu0 %v228, 1
        %v368 = vpop.permute.xlu0 %367
        %369 = vrot.lane.b32.xlu0 %v229, 1
        %v370 = vpop.permute.xlu0 %369
        %vm371 = vcmp.lt.s32.totalorder %v247, 1
        %v372 = vsel %vm371, %v368, %v370
        %v373 = vsel %vm371, %v366, %v368
        %v374 = vsel %vm371, %v364, %v366
        %v375 = vsel %vm371, %v362, %v364
        %v376 = vsel %vm371, %v360, %v362
        %v377 = vsel %vm371, %v358, %v360
        %v378 = vsel %vm371, %v356, %v358
        %v379 = vsel %vm371, %v370, %v356
        %v380 = vld [vmem:[#allocation7 + $0xc0] sm:$0xff]
        %v381 = vld [vmem:[#allocation7 + $0xc8] sm:$0xff]
        %v382 = vld [vmem:[#allocation7 + $0xd0] sm:$0xff]
        %v383 = vld [vmem:[#allocation7 + $0xd8] sm:$0xff]
        %v384 = vld [vmem:[#allocation7 + $0xe0] sm:$0xff]
        %v385 = vld [vmem:[#allocation7 + $0xe8] sm:$0xff]
        %v386 = vld [vmem:[#allocation7 + $0xf0] sm:$0xff]
        %v387 = vld [vmem:[#allocation7 + $0xf8] sm:$0xff]
        %v388 = vmul.f32 %v379, %v380
        %v389 = vmul.f32 %v378, %v381
        %v390 = vmul.f32 %v377, %v382
        %v391 = vmul.f32 %v376, %v383
        %v392 = vmul.f32 %v375, %v384
        %v393 = vmul.f32 %v374, %v385
        %v394 = vmul.f32 %v373, %v386
        %v395 = vmul.f32 %v372, %v387
        %v396 = vld [vmem:[#allocation7 + $0x100] sm:$0xff]
        %v397 = vld [vmem:[#allocation7 + $0x108] sm:$0xff]
        %v398 = vld [vmem:[#allocation7 + $0x110] sm:$0xff]
        %v399 = vld [vmem:[#allocation7 + $0x118] sm:$0xff]
        %v400 = vld [vmem:[#allocation7 + $0x120] sm:$0xff]
        %v401 = vld [vmem:[#allocation7 + $0x128] sm:$0xff]
        %v402 = vld [vmem:[#allocation7 + $0x130] sm:$0xff]
        %v403 = vld [vmem:[#allocation7 + $0x138] sm:$0xff]
        %v404 = vmul.f32 %v219, %v396
        %v405 = vmul.f32 %v220, %v397
        %v406 = vmul.f32 %v222, %v398
        %v407 = vmul.f32 %v223, %v399
        %v408 = vmul.f32 %v225, %v400
        %v409 = vmul.f32 %v226, %v401
        %v410 = vmul.f32 %v228, %v402
        %v411 = vmul.f32 %v229, %v403
        %412 = vrot.lane.b32.xlu0 %v219, 127
        %v413 = vpop.permute.xlu0 %412
        %414 = vrot.lane.b32.xlu0 %v220, 127
        %v415 = vpop.permute.xlu0 %414
        %416 = vrot.lane.b32.xlu0 %v222, 127
        %v417 = vpop.permute.xlu0 %416
        %418 = vrot.lane.b32.xlu0 %v223, 127
        %v419 = vpop.permute.xlu0 %418
        %420 = vrot.lane.b32.xlu0 %v225, 127
        %v421 = vpop.permute.xlu0 %420
        %422 = vrot.lane.b32.xlu0 %v226, 127
        %v423 = vpop.permute.xlu0 %422
        %424 = vrot.lane.b32.xlu0 %v228, 127
        %v425 = vpop.permute.xlu0 %424
        %426 = vrot.lane.b32.xlu0 %v229, 127
        %v427 = vpop.permute.xlu0 %426
        %vm428 = vcmp.lt.s32.totalorder %v247, 127
        %v429 = vsel %vm428, %v425, %v427
        %v430 = vsel %vm428, %v423, %v425
        %v431 = vsel %vm428, %v421, %v423
        %v432 = vsel %vm428, %v419, %v421
        %v433 = vsel %vm428, %v417, %v419
        %v434 = vsel %vm428, %v415, %v417
        %v435 = vsel %vm428, %v413, %v415
        %v436 = vsel %vm428, %v427, %v413
        %v437 = vld [vmem:[#allocation7 + $0x140] sm:$0xff]
        %v438 = vld [vmem:[#allocation7 + $0x148] sm:$0xff]
        %v439 = vld [vmem:[#allocation7 + $0x150] sm:$0xff]
        %v440 = vld [vmem:[#allocation7 + $0x158] sm:$0xff]
        %v441 = vld [vmem:[#allocation7 + $0x160] sm:$0xff]
        %v442 = vld [vmem:[#allocation7 + $0x168] sm:$0xff]
        %v443 = vld [vmem:[#allocation7 + $0x170] sm:$0xff]
        %v444 = vld [vmem:[#allocation7 + $0x178] sm:$0xff]
        %v445 = vmul.f32 %v435, %v437
        %v446 = vmul.f32 %v434, %v438
        %v447 = vmul.f32 %v433, %v439
        %v448 = vmul.f32 %v432, %v440
        %v449 = vmul.f32 %v431, %v441
        %v450 = vmul.f32 %v430, %v442
        %v451 = vmul.f32 %v429, %v443
        %v452 = vmul.f32 %v436, %v444
        %453 = vrot.lane.b32.xlu0 %v219, 113
        %v454 = vpop.permute.xlu0 %453
        %455 = vrot.lane.b32.xlu0 %v220, 113
        %v456 = vpop.permute.xlu0 %455
        %457 = vrot.lane.b32.xlu0 %v222, 113
        %v458 = vpop.permute.xlu0 %457
        %459 = vrot.lane.b32.xlu0 %v223, 113
        %v460 = vpop.permute.xlu0 %459
        %461 = vrot.lane.b32.xlu0 %v225, 113
        %v462 = vpop.permute.xlu0 %461
        %463 = vrot.lane.b32.xlu0 %v226, 113
        %v464 = vpop.permute.xlu0 %463
        %465 = vrot.lane.b32.xlu0 %v228, 113
        %v466 = vpop.permute.xlu0 %465
        %467 = vrot.lane.b32.xlu0 %v229, 113
        %v468 = vpop.permute.xlu0 %467
        %vm469 = vcmp.lt.s32.totalorder %v247, 113
        %v470 = vsel %vm469, %v466, %v468
        %v471 = vsel %vm469, %v464, %v466
        %v472 = vsel %vm469, %v462, %v464
        %v473 = vsel %vm469, %v460, %v462
        %v474 = vsel %vm469, %v458, %v460
        %v475 = vsel %vm469, %v456, %v458
        %v476 = vsel %vm469, %v454, %v456
        %v477 = vsel %vm469, %v468, %v454
        %v478 = vld [vmem:[#allocation7 + $0x180] sm:$0xff]
        %v479 = vld [vmem:[#allocation7 + $0x188] sm:$0xff]
        %v480 = vld [vmem:[#allocation7 + $0x190] sm:$0xff]
        %v481 = vld [vmem:[#allocation7 + $0x198] sm:$0xff]
        %v482 = vld [vmem:[#allocation7 + $0x1a0] sm:$0xff]
        %v483 = vld [vmem:[#allocation7 + $0x1a8] sm:$0xff]
        %v484 = vld [vmem:[#allocation7 + $0x1b0] sm:$0xff]
        %v485 = vld [vmem:[#allocation7 + $0x1b8] sm:$0xff]
        %v486 = vmul.f32 %v476, %v478
        %v487 = vmul.f32 %v475, %v479
        %v488 = vmul.f32 %v474, %v480
        %v489 = vmul.f32 %v473, %v481
        %v490 = vmul.f32 %v472, %v482
        %v491 = vmul.f32 %v471, %v483
        %v492 = vmul.f32 %v470, %v484
        %v493 = vmul.f32 %v477, %v485
        %494 = vrot.lane.b32.xlu0 %v219, 112
        %v495 = vpop.permute.xlu0 %494
        %496 = vrot.lane.b32.xlu0 %v220, 112
        %v497 = vpop.permute.xlu0 %496
        %498 = vrot.lane.b32.xlu0 %v222, 112
        %v499 = vpop.permute.xlu0 %498
        %500 = vrot.lane.b32.xlu0 %v223, 112
        %v501 = vpop.permute.xlu0 %500
        %502 = vrot.lane.b32.xlu0 %v225, 112
        %v503 = vpop.permute.xlu0 %502
        %504 = vrot.lane.b32.xlu0 %v226, 112
        %v505 = vpop.permute.xlu0 %504
        %506 = vrot.lane.b32.xlu0 %v228, 112
        %v507 = vpop.permute.xlu0 %506
        %508 = vrot.lane.b32.xlu0 %v229, 112
        %v509 = vpop.permute.xlu0 %508
        %vm510 = vcmp.lt.s32.totalorder %v247, 112
        %v511 = vsel %vm510, %v507, %v509
        %v512 = vsel %vm510, %v505, %v507
        %v513 = vsel %vm510, %v503, %v505
        %v514 = vsel %vm510, %v501, %v503
        %v515 = vsel %vm510, %v499, %v501
        %v516 = vsel %vm510, %v497, %v499
        %v517 = vsel %vm510, %v495, %v497
        %v518 = vsel %vm510, %v509, %v495
        %v519 = vld [vmem:[#allocation7 + $0x1c0] sm:$0xff]
        %v520 = vld [vmem:[#allocation7 + $0x1c8] sm:$0xff]
        %v521 = vld [vmem:[#allocation7 + $0x1d0] sm:$0xff]
        %v522 = vld [vmem:[#allocation7 + $0x1d8] sm:$0xff]
        %v523 = vld [vmem:[#allocation7 + $0x1e0] sm:$0xff]
        %v524 = vld [vmem:[#allocation7 + $0x1e8] sm:$0xff]
        %v525 = vld [vmem:[#allocation7 + $0x1f0] sm:$0xff]
        %v526 = vld [vmem:[#allocation7 + $0x1f8] sm:$0xff]
        %v527 = vmul.f32 %v517, %v519
        %v528 = vmul.f32 %v516, %v520
        %v529 = vmul.f32 %v515, %v521
        %v530 = vmul.f32 %v514, %v522
        %v531 = vmul.f32 %v513, %v523
        %v532 = vmul.f32 %v512, %v524
        %v533 = vmul.f32 %v511, %v525
        %v534 = vmul.f32 %v518, %v526
        %535 = vrot.lane.b32.xlu0 %v219, 111
        %v536 = vpop.permute.xlu0 %535
        %537 = vrot.lane.b32.xlu0 %v220, 111
        %v538 = vpop.permute.xlu0 %537
        %539 = vrot.lane.b32.xlu0 %v222, 111
        %v540 = vpop.permute.xlu0 %539
        %541 = vrot.lane.b32.xlu0 %v223, 111
        %v542 = vpop.permute.xlu0 %541
        %543 = vrot.lane.b32.xlu0 %v225, 111
        %v544 = vpop.permute.xlu0 %543
        %545 = vrot.lane.b32.xlu0 %v226, 111
        %v546 = vpop.permute.xlu0 %545
        %547 = vrot.lane.b32.xlu0 %v228, 111
        %v548 = vpop.permute.xlu0 %547
        %549 = vrot.lane.b32.xlu0 %v229, 111
        %v550 = vpop.permute.xlu0 %549
        %vm551 = vcmp.lt.s32.totalorder %v247, 111
        %v552 = vsel %vm551, %v548, %v550
        %v553 = vsel %vm551, %v546, %v548
        %v554 = vsel %vm551, %v544, %v546
        %v555 = vsel %vm551, %v542, %v544
        %v556 = vsel %vm551, %v540, %v542
        %v557 = vsel %vm551, %v538, %v540
        %v558 = vsel %vm551, %v536, %v538
        %v559 = vsel %vm551, %v550, %v536
        %v560 = vld [vmem:[#allocation7 + $0x200] sm:$0xff]
        %v561 = vld [vmem:[#allocation7 + $0x208] sm:$0xff]
        %v562 = vld [vmem:[#allocation7 + $0x210] sm:$0xff]
        %v563 = vld [vmem:[#allocation7 + $0x218] sm:$0xff]
        %v564 = vld [vmem:[#allocation7 + $0x220] sm:$0xff]
        %v565 = vld [vmem:[#allocation7 + $0x228] sm:$0xff]
        %v566 = vld [vmem:[#allocation7 + $0x230] sm:$0xff]
        %v567 = vld [vmem:[#allocation7 + $0x238] sm:$0xff]
        %v568 = vmul.f32 %v558, %v560
        %v569 = vmul.f32 %v557, %v561
        %v570 = vmul.f32 %v556, %v562
        %v571 = vmul.f32 %v555, %v563
        %v572 = vmul.f32 %v554, %v564
        %v573 = vmul.f32 %v553, %v565
        %v574 = vmul.f32 %v552, %v566
        %v575 = vmul.f32 %v559, %v567
        %v576 = vld [vmem:[#allocation5] sm:$0xff]
        %vm577 = vcmask 588800
        %v579 = vsel %vm577, %v576, 0
        %581 = vmatprep.subr.mxu0 0.0
        %582 = vmatpush1.msra.mxu0 0.0
        %583 = vmatprep.subr.mxu0 0.0
        %584 = vmatpush1.msra.mxu0 0.0
        %585 = vmatprep.subr.mxu0 0.0
        %586 = vmatpush1.msra.mxu0 0.0
        %587 = vmatprep.subr.mxu0 0.0
        %588 = vmatpush1.msra.mxu0 0.0
        %589 = vmatprep.subr.mxu0 0.0
        %590 = vmatpush1.msra.mxu0 0.0
        %591 = vmatprep.subr.mxu0 0.0
        %592 = vmatpush1.msra.mxu0 0.0
        %593 = vmatprep.subr.mxu0 0.0
        %594 = vmatpush1.msra.mxu0 0.0
        %595 = vmatprep.subr.mxu0 %v569
        %596 = vmatpush1.msra.mxu0 %v568
        %597 = vmatprep.subr.mxu0 %v528
        %598 = vmatpush1.msra.mxu0 %v527
        %599 = vmatprep.subr.mxu0 %v487
        %600 = vmatpush1.msra.mxu0 %v486
        %601 = vmatprep.subr.mxu0 %v446
        %602 = vmatpush1.msra.mxu0 %v445
        %603 = vmatprep.subr.mxu0 %v405
        %604 = vmatpush1.msra.mxu0 %v404
        %605 = vmatprep.subr.mxu0 %v389
        %606 = vmatpush1.msra.mxu0 %v388
        %607 = vmatprep.subr.mxu0 %v348
        %608 = vmatpush1.msra.mxu0 %v347
        %609 = vmatprep.subr.mxu0 %v307
        %610 = vmatpush1.msra.mxu0 %v306
        %611 = vmatprep.subr.mxu0 %v266
        %612 = vmatpush1.msra.mxu0 %v265
        %613 = vmatprep.subr.mxu0 0.0
        %614 = vmatpush2.msra.mxu0 0.0
        %615 = vmatprep.subr.mxu0 0.0
        %616 = vmatpush2.msra.mxu0 0.0
        %617 = vmatprep.subr.mxu0 0.0
        %618 = vmatpush2.msra.mxu0 0.0
        %619 = vmatprep.subr.mxu0 0.0
        %620 = vmatpush2.msra.mxu0 0.0
        %621 = vmatprep.subr.mxu0 0.0
        %622 = vmatpush2.msra.mxu0 0.0
        %623 = vmatprep.subr.mxu0 0.0
        %624 = vmatpush2.msra.mxu0 0.0
        %625 = vmatprep.subr.mxu0 0.0
        %626 = vmatpush2.msra.mxu0 0.0
        %627 = vmatprep.subr.mxu0 0.0
        %628 = vmatpush2.msra.mxu0 0.0
        %629 = vmatprep.subr.mxu0 0.0
        %630 = vmatpush2.msra.mxu0 0.0
        %631 = vmatprep.subr.mxu0 0.0
        %632 = vmatpush2.msra.mxu0 0.0
        %633 = vmatprep.subr.mxu0 0.0
        %634 = vmatpush2.msra.mxu0 0.0
        %635 = vmatprep.subr.mxu0 0.0
        %636 = vmatpush2.msra.mxu0 0.0
        %637 = vmatprep.subr.mxu0 0.0
        %638 = vmatpush2.msra.mxu0 0.0
        %639 = vmatprep.subr.mxu0 0.0
        %640 = vmatpush2.msra.mxu0 0.0
        %641 = vmatprep.subr.mxu0 0.0
        %642 = vmatpush2.msra.mxu0 0.0
        %643 = vmatprep.subr.mxu0 0.0
        %644 = vmatpush2.msra.mxu0 0.0
        %645 = vmatprep.mubr.f32.mxu0 0.0
        %646 = vmatmul.mubr.f32.gmra.mxu0 %v579
        %v647 = vpop.f32.mrf.mxu0
        %v648 = vadd.f32 0.0, %v647
        %v649 = vpop.f32.mrf.mxu0
        %v650 = vadd.f32 0.0, %v649
        %651 = vdwg.mxu0
        %652 = vmatprep.subr.mxu0 0.0
        %653 = vmatpush1.msra.mxu0 0.0
        %654 = vmatprep.subr.mxu0 0.0
        %655 = vmatpush1.msra.mxu0 0.0
        %656 = vmatprep.subr.mxu0 0.0
        %657 = vmatpush1.msra.mxu0 0.0
        %658 = vmatprep.subr.mxu0 0.0
        %659 = vmatpush1.msra.mxu0 0.0
        %660 = vmatprep.subr.mxu0 0.0
        %661 = vmatpush1.msra.mxu0 0.0
        %662 = vmatprep.subr.mxu0 0.0
        %663 = vmatpush1.msra.mxu0 0.0
        %664 = vmatprep.subr.mxu0 0.0
        %665 = vmatpush1.msra.mxu0 0.0
        %666 = vmatprep.subr.mxu0 %v571
        %667 = vmatpush1.msra.mxu0 %v570
        %668 = vmatprep.subr.mxu0 %v530
        %669 = vmatpush1.msra.mxu0 %v529
        %670 = vmatprep.subr.mxu0 %v489
        %671 = vmatpush1.msra.mxu0 %v488
        %672 = vmatprep.subr.mxu0 %v448
        %673 = vmatpush1.msra.mxu0 %v447
        %674 = vmatprep.subr.mxu0 %v407
        %675 = vmatpush1.msra.mxu0 %v406
        %676 = vmatprep.subr.mxu0 %v391
        %677 = vmatpush1.msra.mxu0 %v390
        %678 = vmatprep.subr.mxu0 %v350
        %679 = vmatpush1.msra.mxu0 %v349
        %680 = vmatprep.subr.mxu0 %v309
        %681 = vmatpush1.msra.mxu0 %v308
        %682 = vmatprep.subr.mxu0 %v268
        %683 = vmatpush1.msra.mxu0 %v267
        %684 = vmatprep.subr.mxu0 0.0
        %685 = vmatpush2.msra.mxu0 0.0
        %686 = vmatprep.subr.mxu0 0.0
        %687 = vmatpush2.msra.mxu0 0.0
        %688 = vmatprep.subr.mxu0 0.0
        %689 = vmatpush2.msra.mxu0 0.0
        %690 = vmatprep.subr.mxu0 0.0
        %691 = vmatpush2.msra.mxu0 0.0
        %692 = vmatprep.subr.mxu0 0.0
        %693 = vmatpush2.msra.mxu0 0.0
        %694 = vmatprep.subr.mxu0 0.0
        %695 = vmatpush2.msra.mxu0 0.0
        %696 = vmatprep.subr.mxu0 0.0
        %697 = vmatpush2.msra.mxu0 0.0
        %698 = vmatprep.subr.mxu0 0.0
        %699 = vmatpush2.msra.mxu0 0.0
        %700 = vmatprep.subr.mxu0 0.0
        %701 = vmatpush2.msra.mxu0 0.0
        %702 = vmatprep.subr.mxu0 0.0
        %703 = vmatpush2.msra.mxu0 0.0
        %704 = vmatprep.subr.mxu0 0.0
        %705 = vmatpush2.msra.mxu0 0.0
        %706 = vmatprep.subr.mxu0 0.0
        %707 = vmatpush2.msra.mxu0 0.0
        %708 = vmatprep.subr.mxu0 0.0
        %709 = vmatpush2.msra.mxu0 0.0
        %710 = vmatprep.subr.mxu0 0.0
        %711 = vmatpush2.msra.mxu0 0.0
        %712 = vmatprep.subr.mxu0 0.0
        %713 = vmatpush2.msra.mxu0 0.0
        %714 = vmatprep.subr.mxu0 0.0
        %715 = vmatpush2.msra.mxu0 0.0
        %716 = vmatprep.mubr.f32.mxu0 0.0
        %717 = vmatmul.mubr.f32.gmra.mxu0 %v579
        %v718 = vpop.f32.mrf.mxu0
        %v719 = vadd.f32 0.0, %v718
        %v720 = vpop.f32.mrf.mxu0
        %v721 = vadd.f32 0.0, %v720
        %722 = vdwg.mxu0
        %723 = vmatprep.subr.mxu0 0.0
        %724 = vmatpush1.msra.mxu0 0.0
        %725 = vmatprep.subr.mxu0 0.0
        %726 = vmatpush1.msra.mxu0 0.0
        %727 = vmatprep.subr.mxu0 0.0
        %728 = vmatpush1.msra.mxu0 0.0
        %729 = vmatprep.subr.mxu0 0.0
        %730 = vmatpush1.msra.mxu0 0.0
        %731 = vmatprep.subr.mxu0 0.0
        %732 = vmatpush1.msra.mxu0 0.0
        %733 = vmatprep.subr.mxu0 0.0
        %734 = vmatpush1.msra.mxu0 0.0
        %735 = vmatprep.subr.mxu0 0.0
        %736 = vmatpush1.msra.mxu0 0.0
        %737 = vmatprep.subr.mxu0 %v573
        %738 = vmatpush1.msra.mxu0 %v572
        %739 = vmatprep.subr.mxu0 %v532
        %740 = vmatpush1.msra.mxu0 %v531
        %741 = vmatprep.subr.mxu0 %v491
        %742 = vmatpush1.msra.mxu0 %v490
        %743 = vmatprep.subr.mxu0 %v450
        %744 = vmatpush1.msra.mxu0 %v449
        %745 = vmatprep.subr.mxu0 %v409
        %746 = vmatpush1.msra.mxu0 %v408
        %747 = vmatprep.subr.mxu0 %v393
        %748 = vmatpush1.msra.mxu0 %v392
        %749 = vmatprep.subr.mxu0 %v352
        %750 = vmatpush1.msra.mxu0 %v351
        %751 = vmatprep.subr.mxu0 %v311
        %752 = vmatpush1.msra.mxu0 %v310
        %753 = vmatprep.subr.mxu0 %v270
        %754 = vmatpush1.msra.mxu0 %v269
        %755 = vmatprep.subr.mxu0 0.0
        %756 = vmatpush2.msra.mxu0 0.0
        %757 = vmatprep.subr.mxu0 0.0
        %758 = vmatpush2.msra.mxu0 0.0
        %759 = vmatprep.subr.mxu0 0.0
        %760 = vmatpush2.msra.mxu0 0.0
        %761 = vmatprep.subr.mxu0 0.0
        %762 = vmatpush2.msra.mxu0 0.0
        %763 = vmatprep.subr.mxu0 0.0
        %764 = vmatpush2.msra.mxu0 0.0
        %765 = vmatprep.subr.mxu0 0.0
        %766 = vmatpush2.msra.mxu0 0.0
        %767 = vmatprep.subr.mxu0 0.0
        %768 = vmatpush2.msra.mxu0 0.0
        %769 = vmatprep.subr.mxu0 0.0
        %770 = vmatpush2.msra.mxu0 0.0
        %771 = vmatprep.subr.mxu0 0.0
        %772 = vmatpush2.msra.mxu0 0.0
        %773 = vmatprep.subr.mxu0 0.0
        %774 = vmatpush2.msra.mxu0 0.0
        %775 = vmatprep.subr.mxu0 0.0
        %776 = vmatpush2.msra.mxu0 0.0
        %777 = vmatprep.subr.mxu0 0.0
        %778 = vmatpush2.msra.mxu0 0.0
        %779 = vmatprep.subr.mxu0 0.0
        %780 = vmatpush2.msra.mxu0 0.0
        %781 = vmatprep.subr.mxu0 0.0
        %782 = vmatpush2.msra.mxu0 0.0
        %783 = vmatprep.subr.mxu0 0.0
        %784 = vmatpush2.msra.mxu0 0.0
        %785 = vmatprep.subr.mxu0 0.0
        %786 = vmatpush2.msra.mxu0 0.0
        %787 = vmatprep.mubr.f32.mxu0 0.0
        %788 = vmatmul.mubr.f32.gmra.mxu0 %v579
        %v789 = vpop.f32.mrf.mxu0
        %v790 = vadd.f32 0.0, %v789
        %v791 = vpop.f32.mrf.mxu0
        %v792 = vadd.f32 0.0, %v791
        %793 = vdwg.mxu0
        %794 = vmatprep.subr.mxu0 0.0
        %795 = vmatpush1.msra.mxu0 0.0
        %796 = vmatprep.subr.mxu0 0.0
        %797 = vmatpush1.msra.mxu0 0.0
        %798 = vmatprep.subr.mxu0 0.0
        %799 = vmatpush1.msra.mxu0 0.0
        %800 = vmatprep.subr.mxu0 0.0
        %801 = vmatpush1.msra.mxu0 0.0
        %802 = vmatprep.subr.mxu0 0.0
        %803 = vmatpush1.msra.mxu0 0.0
        %804 = vmatprep.subr.mxu0 0.0
        %805 = vmatpush1.msra.mxu0 0.0
        %806 = vmatprep.subr.mxu0 0.0
        %807 = vmatpush1.msra.mxu0 0.0
        %808 = vmatprep.subr.mxu0 %v575
        %809 = vmatpush1.msra.mxu0 %v574
        %810 = vmatprep.subr.mxu0 %v534
        %811 = vmatpush1.msra.mxu0 %v533
        %812 = vmatprep.subr.mxu0 %v493
        %813 = vmatpush1.msra.mxu0 %v492
        %814 = vmatprep.subr.mxu0 %v452
        %815 = vmatpush1.msra.mxu0 %v451
        %816 = vmatprep.subr.mxu0 %v411
        %817 = vmatpush1.msra.mxu0 %v410
        %818 = vmatprep.subr.mxu0 %v395
        %819 = vmatpush1.msra.mxu0 %v394
        %820 = vmatprep.subr.mxu0 %v354
        %821 = vmatpush1.msra.mxu0 %v353
        %822 = vmatprep.subr.mxu0 %v313
        %823 = vmatpush1.msra.mxu0 %v312
        %824 = vmatprep.subr.mxu0 %v272
        %825 = vmatpush1.msra.mxu0 %v271
        %826 = vmatprep.subr.mxu0 0.0
        %827 = vmatpush2.msra.mxu0 0.0
        %828 = vmatprep.subr.mxu0 0.0
        %829 = vmatpush2.msra.mxu0 0.0
        %830 = vmatprep.subr.mxu0 0.0
        %831 = vmatpush2.msra.mxu0 0.0
        %832 = vmatprep.subr.mxu0 0.0
        %833 = vmatpush2.msra.mxu0 0.0
        %834 = vmatprep.subr.mxu0 0.0
        %835 = vmatpush2.msra.mxu0 0.0
        %836 = vmatprep.subr.mxu0 0.0
        %837 = vmatpush2.msra.mxu0 0.0
        %838 = vmatprep.subr.mxu0 0.0
        %839 = vmatpush2.msra.mxu0 0.0
        %840 = vmatprep.subr.mxu0 0.0
        %841 = vmatpush2.msra.mxu0 0.0
        %842 = vmatprep.subr.mxu0 0.0
        %843 = vmatpush2.msra.mxu0 0.0
        %844 = vmatprep.subr.mxu0 0.0
        %845 = vmatpush2.msra.mxu0 0.0
        %846 = vmatprep.subr.mxu0 0.0
        %847 = vmatpush2.msra.mxu0 0.0
        %848 = vmatprep.subr.mxu0 0.0
        %849 = vmatpush2.msra.mxu0 0.0
        %850 = vmatprep.subr.mxu0 0.0
        %851 = vmatpush2.msra.mxu0 0.0
        %852 = vmatprep.subr.mxu0 0.0
        %853 = vmatpush2.msra.mxu0 0.0
        %854 = vmatprep.subr.mxu0 0.0
        %855 = vmatpush2.msra.mxu0 0.0
        %856 = vmatprep.subr.mxu0 0.0
        %857 = vmatpush2.msra.mxu0 0.0
        %858 = vmatprep.mubr.f32.mxu0 0.0
        %859 = vmatmul.mubr.f32.gmra.mxu0 %v579
        %v860 = vpop.f32.mrf.mxu0
        %v861 = vadd.f32 0.0, %v860
        %v862 = vpop.f32.mrf.mxu0
        %v863 = vadd.f32 0.0, %v862
        %864 = vdwg.mxu0
        %v865 = vadd.f32 %v648, %v650
        %866 = vadd.xlane.f32.xlu0 %v865
        %v867 = vpop.xlane.xlu0 %866
        %v868 = vmul.f32 %v867, 0.00390625
        %v869 = vsub.f32 %v648, %v868
        %v870 = vsub.f32 %v650, %v868
        %v871 = vmul.f32 %v869, %v869
        %v872 = vmul.f32 %v870, %v870
        %v873 = vadd.f32 %v871, %v872
        %874 = vadd.xlane.f32.xlu0 %v873
        %v875 = vpop.xlane.xlu0 %874
        %v876 = vmul.f32 %v875, 0.00390625
        %v877 = vadd.f32 %v876, 1e-05
        %v878 = vrsqrt.pop %v877
        %v879 = vmul.f32 %v869, %v878
        %v880 = vmul.f32 %v870, %v878
        %v881 = vmax.f32 %v879, 0.0
        %v882 = vmax.f32 %v880, 0.0
        %883 = vst [vmem:[%s216] sm:$0xff] %v881
        %884 = vst [vmem:[%s216 + $0x8] sm:$0xff] %v882
        %v885 = vadd.f32 %v719, %v721
        %886 = vadd.xlane.f32.xlu0 %v885
        %v887 = vpop.xlane.xlu0 %886
        %v888 = vmul.f32 %v887, 0.00390625
        %v889 = vsub.f32 %v719, %v888
        %v890 = vsub.f32 %v721, %v888
        %v891 = vmul.f32 %v889, %v889
        %v892 = vmul.f32 %v890, %v890
        %v893 = vadd.f32 %v891, %v892
        %894 = vadd.xlane.f32.xlu0 %v893
        %v895 = vpop.xlane.xlu0 %894
        %v896 = vmul.f32 %v895, 0.00390625
        %v897 = vadd.f32 %v896, 1e-05
        %v898 = vrsqrt.pop %v897
        %v899 = vmul.f32 %v889, %v898
        %v900 = vmul.f32 %v890, %v898
        %v901 = vmax.f32 %v899, 0.0
        %v902 = vmax.f32 %v900, 0.0
        %s903 = scalar_lea.vmem %s216, 16 [#allocation8]
        %904 = vst [vmem:[%s903] sm:$0xff] %v901
        %905 = vst [vmem:[%s903 + $0x8] sm:$0xff] %v902
        %v906 = vadd.f32 %v790, %v792
        %907 = vadd.xlane.f32.xlu0 %v906
        %v908 = vpop.xlane.xlu0 %907
        %v909 = vmul.f32 %v908, 0.00390625
        %v910 = vsub.f32 %v790, %v909
        %v911 = vsub.f32 %v792, %v909
        %v912 = vmul.f32 %v910, %v910
        %v913 = vmul.f32 %v911, %v911
        %v914 = vadd.f32 %v912, %v913
        %915 = vadd.xlane.f32.xlu0 %v914
        %v916 = vpop.xlane.xlu0 %915
        %v917 = vmul.f32 %v916, 0.00390625
        %v918 = vadd.f32 %v917, 1e-05
        %v919 = vrsqrt.pop %v918
        %v920 = vmul.f32 %v910, %v919
        %v921 = vmul.f32 %v911, %v919
        %v922 = vmax.f32 %v920, 0.0
        %v923 = vmax.f32 %v921, 0.0
        %s924 = scalar_lea.vmem %s216, 32 [#allocation8]
        %925 = vst [vmem:[%s924] sm:$0xff] %v922
        %926 = vst [vmem:[%s924 + $0x8] sm:$0xff] %v923
        %v927 = vadd.f32 %v861, %v863
        %928 = vadd.xlane.f32.xlu0 %v927
        %v929 = vpop.xlane.xlu0 %928
        %v930 = vmul.f32 %v929, 0.00390625
        %v931 = vsub.f32 %v861, %v930
        %v932 = vsub.f32 %v863, %v930
        %v933 = vmul.f32 %v931, %v931
        %v934 = vmul.f32 %v932, %v932
        %v935 = vadd.f32 %v933, %v934
        %936 = vadd.xlane.f32.xlu0 %v935
        %v937 = vpop.xlane.xlu0 %936
        %v938 = vmul.f32 %v937, 0.00390625
        %v939 = vadd.f32 %v938, 1e-05
        %v940 = vrsqrt.pop %v939
        %v941 = vmul.f32 %v931, %v940
        %v942 = vmul.f32 %v932, %v940
        %v943 = vmax.f32 %v941, 0.0
        %v944 = vmax.f32 %v942, 0.0
        %s945 = scalar_lea.vmem %s216, 48 [#allocation8]
        %946 = vst [vmem:[%s945] sm:$0xff] %v943
        %947 = vst [vmem:[%s945 + $0x8] sm:$0xff] %v944
        %s948 = sand.u32 %s97, 1
        %s949 = scalar_lea.sflag [#allocation4], %s948
        %s950 = sand.u32 %s97, 1
        %s951 = smul.addr %s950, 64
        %s952 = scalar_lea.vmem [#allocation8], %s951
        // Predicated region
        $region45: #{tpu_custom_call.1} parent=31 // pred_check
          %p953 = pneg %p107
        $region46: #{tpu_custom_call.1} parent=31 // pred_check_branch
          %955 = sbr.rel (%p953) target = $region48
        $region47: #{tpu_custom_call.1} parent=31 // pred_region
          %s956 = smul.u32 4, %s21
          %s958 = ssub.s32 1024, 1024
          %959 = vsyncadd %s949, %s958
          %s960 = smul.addr %s956, 2
          %s961 = smul.addr %s960, 128
          %s962 = scalar_lea.hbm %s3, %s961
          %s963 = sshll.u32 %s952, 4
          %s964 = int_to_ptr.vmem [resolvable:$true] %s963
          %969 = dma.vmem_to_hbm [thread:$0]  %s964, 1024, %s962, %s949, 256, 256, 16
        $region48: #{tpu_custom_call.1} parent=31 // pred_fallthru
          _
      $region32: #{tpu_custom_call.1} parent=5 // pred_fallthru
        _
      %p970 = scmp.le.s32.totalorder 2, %s16
      // Predicated region
      $region49: #{tpu_custom_call.1} parent=5 // pred_check
        %p971 = pneg %p970
      $region50: #{tpu_custom_call.1} parent=5 // pred_check_branch
        %973 = sbr.rel (%p971) target = $region52
      $region51: #{tpu_custom_call.1} parent=5 // pred_region
        %s974 = ssub.s32 %s16, 2
        // Predicated region
        $region53: #{tpu_custom_call.1} parent=51 // pred_check
          %p975 = pneg %p113
        $region54: #{tpu_custom_call.1} parent=51 // pred_check_branch
          %977 = sbr.rel (%p975) target = $region56
        $region55: #{tpu_custom_call.1} parent=51 // pred_region
          %s978 = sand.u32 %s98, 1
          %s979 = scalar_lea.sflag [#allocation4], %s978
          %s980 = sand.u32 %s98, 1
          %s981 = smul.addr %s980, 64
          %s982 = scalar_lea.vmem [#allocation8], %s981
          %983 = dma.done %s979, 1024
        $region56: #{tpu_custom_call.1} parent=51 // pred_fallthru
          _
      $region52: #{tpu_custom_call.1} parent=5 // pred_fallthru
        _
    $region6: #{tpu_custom_call.1} parent=1 // loop_footer
      %s20 = sadd.s32 1, %s16
    $region7: #{tpu_custom_call.1} parent=1 // loop_footer_branch
      %15 = sbr.rel target = $region3
    $region8: #{tpu_custom_call.1} parent=1 // loop_exit
      _
    %984 = vsyncpa [#allocation3], 1
    %s985 = scalar_lea.sflag [#allocation3], 1
    %986 = vsyncpa %s985, 1
    %987 = vsyncpa [#allocation6], 1
    %988 = vsyncpa [#allocation4], 1
    %s989 = scalar_lea.sflag [#allocation4], 1
    %990 = vsyncpa %s989, 1

</llo_original>
